<compile_context>
chip_gen: v5e
topology: v5e:2x2
jax: 0.10.0
libtpu: 0.0.40
codegen_flags: <defaults>
</compile_context>

<pallas_src>
import jax
import jax.numpy as jnp
import numpy as np
from jax.experimental import pallas as pl
from jax.experimental.pallas import tpu as pltpu


# --------------------------------- kernels -----------------------------------


def _gcn_hidden_kernel(adj_ref, x_ref, w_ref, b_ref, out_ref):
    """One row tile of H = relu(A @ X @ W + b).  adj_ref: (TM, N) bf16."""
    a = adj_ref[...]                                     # (TM, N)    bf16
    x = x_ref[...]                                       # (N, Din)   bf16
    w = w_ref[...]                                       # (Din, Dout) bf16
    d_in, d_out = w_ref.shape
    if d_in > d_out:
        # Hoist the feature-reducing projection before the N^2 contraction so
        # the big A-matmul only contracts at width Dout instead of Din.
        # TODO(synk): for very large Din a dedicated projection pass would
        # avoid recomputing X @ W per row tile (here it hides under the
        # mem-bound adjacency DMA).
        xw = jnp.dot(x, w, preferred_element_type=jnp.float32)        # (N, Dout)
        h = jnp.dot(a, xw.astype(jnp.bfloat16),
                    preferred_element_type=jnp.float32)               # (TM, Dout)
    else:
        t = jnp.dot(a, x, preferred_element_type=jnp.float32)         # (TM, Din)
        h = jnp.dot(t.astype(jnp.bfloat16), w,
                    preferred_element_type=jnp.float32)               # (TM, Dout)
    h = jnp.maximum(h + b_ref[...], 0.0)                               # f32 VPU
    out_ref[...] = h.astype(out_ref.dtype)


def _gcn_score_kernel(adj_ref, h_ref, w_ref, b_ref, wo_ref, bo_ref, out_ref):
    """One row tile of scores = relu(A @ H @ W + b) @ Wout^T + bout."""
    a = adj_ref[...]                                     # (TM, N)    bf16
    z = h_ref[...]                                       # (N, D1)    bf16
    w = w_ref[...]                                       # (D1, D2)   bf16
    d_in, d_out = w_ref.shape
    if d_in > d_out:
        zw = jnp.dot(z, w, preferred_element_type=jnp.float32)
        e = jnp.dot(a, zw.astype(jnp.bfloat16),
                    preferred_element_type=jnp.float32)
    else:
        t = jnp.dot(a, z, preferred_element_type=jnp.float32)
        e = jnp.dot(t.astype(jnp.bfloat16), w,
                    preferred_element_type=jnp.float32)
    e = jnp.maximum(e + b_ref[...], 0.0)                 # (TM, D2) f32

    # Scoring head nn.Linear(D2, 1): VPU multiply + lane reduction - no width-1
    # MXU matmul (which would use 1 of 128/256 output lanes).
    s = jnp.sum(e * wo_ref[...], axis=-1, keepdims=True) + bo_ref[...]  # (TM, 1)
    out_ref[...] = s.astype(out_ref.dtype)


# --------------------------------- wrapper -----------------------------------


def _pick_tm(n, d_feat, vmem_budget_bytes=32 * 1024 * 1024):
    """Largest row tile (multiple of 32) such that the double-buffered bf16
    adjacency slab plus the resident node-feature block fits a conservative
    VMEM budget (also fits v7x's 64 MiB physical VMEM)."""
    if n <= 256:
        return n
    fixed = 2 * n * d_feat * 2 + (2 << 20)        # features (x / H1) + weights/slack
    avail = max(vmem_budget_bytes - fixed, 1 << 20)
    tm = min(avail // (2 * n * 2), 512, n)        # 2 buffers * 2 B/elem * n cols
    tm = max(32, (int(tm) // 32) * 32)
    return int(min(tm, n))


def _vmem_limit_bytes(tm, n, d_feat):
    need = (2 * tm * n * 2            # double-buffered bf16 adjacency tile
            + 2 * n * d_feat * 2      # resident node-feature block (x or H1)
            + 2 * tm * 128 * 4        # output tile (double-buffered, padded lanes)
            + (4 << 20))              # weights, biases, compiler slack
    return int(min(max(need, 32 << 20), 64 << 20))


def graph_dev_net(x, adj, params, *, tm=None):
    """x: [N, F_in], adj: [N, N] dense adjacency -> scores [N, 1] f32."""
    w1, b1, w2, b2, wo, bo = params
    n, f_in = x.shape
    d1 = w1.shape[1]
    d2 = w2.shape[1]
    d_feat = max(f_in, d1, d2)

    if tm is None:
        tm = _pick_tm(n, d_feat)
    tm = int(min(tm, n))
    n_pad = ((n + tm - 1) // tm) * tm
    if n_pad != n:
        # Zero padding is exact: padded adjacency columns are zero so padded
        # nodes never feed real rows; padded score rows are sliced off below.
        adj = jnp.pad(adj, ((0, n_pad - n), (0, n_pad - n)))
        x = jnp.pad(x, ((0, n_pad - n), (0, 0)))

    # bf16 for everything that feeds the MXU; f32 for bias / ReLU / head (VPU).
    adj_b = adj.astype(jnp.bfloat16)
    x_b = x.astype(jnp.bfloat16)
    w1_b = w1.astype(jnp.bfloat16)
    w2_b = w2.astype(jnp.bfloat16)
    b1 = b1.astype(jnp.float32)
    b2 = b2.astype(jnp.float32)
    wo = wo.astype(jnp.float32)
    bo = bo.astype(jnp.float32)

    grid = (n_pad // tm,)

    def _rows(block_shape):
        return pl.BlockSpec(block_shape, lambda i: (i, 0))

    def _full(a):
        return pl.BlockSpec(a.shape, lambda i, _nd=a.ndim: (0,) * _nd)

    compiler_params = pltpu.CompilerParams(
        # Row tiles are independent -> "parallel" lets v7x's 2 TCs split the grid.
        dimension_semantics=("parallel",),
        vmem_limit_bytes=_vmem_limit_bytes(tm, n_pad, d_feat),
    )

    # ---- layer 1: H1 = relu(A @ X @ W1 + b1), row-tiled over A --------------
    h1 = pl.pallas_call(
        _gcn_hidden_kernel,
        out_shape=jax.ShapeDtypeStruct((n_pad, d1), jnp.bfloat16),
        grid_spec=pltpu.PrefetchScalarGridSpec(
            num_scalar_prefetch=0,
            grid=grid,
            in_specs=[_rows((tm, n_pad)), _full(x_b), _full(w1_b), _full(b1)],
            out_specs=_rows((tm, d1)),
        ),
        compiler_params=compiler_params,
        cost_estimate=pl.CostEstimate(
            flops=2 * n_pad * n_pad * min(f_in, d1) + 2 * n_pad * f_in * d1,
            transcendentals=0,
            bytes_accessed=2 * n_pad * n_pad + 2 * n_pad * (f_in + d1)),
    )(adj_b, x_b, w1_b, b1)

    # ---- layer 2 + scoring head: relu(A @ H1 @ W2 + b2) @ Wout^T + bout -----
    scores = pl.pallas_call(
        _gcn_score_kernel,
        out_shape=jax.ShapeDtypeStruct((n_pad, 1), jnp.float32),
        grid_spec=pltpu.PrefetchScalarGridSpec(
            num_scalar_prefetch=0,
            grid=grid,
            in_specs=[_rows((tm, n_pad)), _full(h1), _full(w2_b), _full(b2),
                      _full(wo), _full(bo)],
            out_specs=_rows((tm, 1)),
        ),
        compiler_params=compiler_params,
        cost_estimate=pl.CostEstimate(
            flops=2 * n_pad * n_pad * min(d1, d2) + 2 * n_pad * d1 * d2
                  + 2 * n_pad * d2,
            transcendentals=0,
            bytes_accessed=2 * n_pad * n_pad + 2 * n_pad * (d1 + d2) + 4 * n_pad),
    )(adj_b, h1, w2_b, b2, wo, bo)

    # TODO(synk): when scoring many graphs, add a leading "parallel" graph axis
    # to the grid to amortize per-call overhead at small N.
    return scores[:n]


# ----------------------------- reference / demo -------------------------------


def _init_params(key, f_in, ebd_dim):
    ks = jax.random.split(key, 6)
    w1 = jax.random.normal(ks[0], (f_in, ebd_dim), jnp.float32) * 0.1
    b1 = jax.random.normal(ks[1], (1, ebd_dim), jnp.float32) * 0.01
    w2 = jax.random.normal(ks[2], (ebd_dim, ebd_dim), jnp.float32) * 0.1
    b2 = jax.random.normal(ks[3], (1, ebd_dim), jnp.float32) * 0.01
    # nn.Linear(ebd_dim, 1): weight [1, ebd_dim], bias [1] (torch layout kept);
    # the head is computed as sum(E * weight, -1) + bias (VPU lane reduce).
    wo = jax.random.normal(ks[4], (1, ebd_dim), jnp.float32) * 0.1
    bo = jax.random.normal(ks[5], (1,), jnp.float32) * 0.01
    return (w1, b1, w2, b2, wo, bo.reshape(1, 1))


def _reference(x, adj, params):
    """f32 reference on the same bf16-rounded inputs the kernel consumes."""
    w1, b1, w2, b2, wo, bo = params
    rnd = lambda t: t.astype(jnp.bfloat16).astype(jnp.float32)
    a, xb, w1b, w2b = rnd(adj), rnd(x), rnd(w1), rnd(w2)
    h = jnp.maximum(a @ (xb @ w1b) + b1, 0.0)
    e = jnp.maximum(a @ h @ w2b + b2, 0.0)
    return jnp.sum(e * wo, axis=-1, keepdims=True) + bo


if __name__ == "__main__":
    N, F_IN, EBD_DIM = 128, 64, 32      # nodes, input feature dim, embedding dim
    TM = 64                             # row tile -> 2 pipelined grid steps

    key = jax.random.PRNGKey(0)
    kx, ka, kp = jax.random.split(key, 3)

    x = jax.random.normal(kx, (N, F_IN), jnp.float32)
    # row-normalized dense adjacency with self-loops
    a = (jax.random.uniform(ka, (N, N)) < 0.1).astype(jnp.float32)
    a = jnp.maximum(a, a.T) + jnp.eye(N, dtype=jnp.float32)
    adj = a / jnp.sum(a, axis=-1, keepdims=True)

    params = _init_params(kp, F_IN, EBD_DIM)

    scores = graph_dev_net(x, adj, params, tm=TM)
    scores = jax.block_until_ready(scores)

    ref = _reference(x, adj, params)
    np.testing.assert_allclose(np.asarray(scores), np.asarray(ref),
                               rtol=2e-2, atol=2e-2)
    assert scores.shape == (N, 1)
    print("KERNEL_OK")
</pallas_src>

<mosaic_0001>
module attributes {stable_mosaic.version = 11 : i64} {
  func.func @_gcn_hidden_kernel(%arg0: i32, %arg1: memref<64x128xbf16, #tpu.memory_space<vmem>>, %arg2: memref<128x64xbf16, #tpu.memory_space<vmem>>, %arg3: memref<64x32xbf16, #tpu.memory_space<vmem>>, %arg4: memref<1x32xf32, #tpu.memory_space<vmem>>, %arg5: memref<64x32xbf16, #tpu.memory_space<vmem>>) attributes {dimension_semantics = [#tpu.dimension_semantics<parallel>], iteration_bounds = array<i64: 2>, scalar_prefetch = 0 : i64, scratch_operands = 0 : i64, tpu.core_type = #tpu.core_type<tc>, window_params = [{transform_indices = @transform_0, window_bounds = array<i64: 64, 128>}, {pipeline_mode = #tpu.pipeline_mode<synchronous>, transform_indices = @transform_1, window_bounds = array<i64: 128, 64>}, {pipeline_mode = #tpu.pipeline_mode<synchronous>, transform_indices = @transform_2, window_bounds = array<i64: 64, 32>}, {pipeline_mode = #tpu.pipeline_mode<synchronous>, transform_indices = @transform_3, window_bounds = array<i64: 1, 32>}, {transform_indices = @transform_4, window_bounds = array<i64: 64, 32>}]} {
    %c0 = arith.constant 0 : index
    %c0_0 = arith.constant 0 : index
    %0 = vector.load %arg1[%c0, %c0_0] : memref<64x128xbf16, #tpu.memory_space<vmem>>, vector<64x128xbf16>
    %c0_1 = arith.constant 0 : index
    %c0_2 = arith.constant 0 : index
    %1 = vector.load %arg2[%c0_1, %c0_2] : memref<128x64xbf16, #tpu.memory_space<vmem>>, vector<128x64xbf16>
    %c0_3 = arith.constant 0 : index
    %c0_4 = arith.constant 0 : index
    %2 = vector.load %arg3[%c0_3, %c0_4] : memref<64x32xbf16, #tpu.memory_space<vmem>>, vector<64x32xbf16>
    %cst = arith.constant dense<0.000000e+00> : vector<128x32xf32>
    %3 = tpu.matmul %1, %2, %cst {dimension_numbers = #tpu.dot_dimension_numbers<[1], [0], [0], [1], [0, 0, 1, 1], [], []>} : vector<128x64xbf16>, vector<64x32xbf16>, vector<128x32xf32> -> vector<128x32xf32>
    %4 = arith.truncf %3 : vector<128x32xf32> to vector<128x32xbf16>
    %cst_5 = arith.constant dense<0.000000e+00> : vector<64x32xf32>
    %5 = tpu.matmul %0, %4, %cst_5 {dimension_numbers = #tpu.dot_dimension_numbers<[1], [0], [0], [1], [0, 0, 1, 1], [], []>} : vector<64x128xbf16>, vector<128x32xbf16>, vector<64x32xf32> -> vector<64x32xf32>
    %c0_6 = arith.constant 0 : index
    %c0_7 = arith.constant 0 : index
    %6 = vector.load %arg4[%c0_6, %c0_7] : memref<1x32xf32, #tpu.memory_space<vmem>>, vector<1x32xf32>
    %7 = vector.broadcast %6 : vector<1x32xf32> to vector<64x32xf32>
    %8 = arith.addf %5, %7 : vector<64x32xf32>
    %cst_8 = arith.constant 0.000000e+00 : f32
    %9 = vector.broadcast %cst_8 : f32 to vector<64x32xf32>
    %10 = arith.maximumf %8, %9 : vector<64x32xf32>
    %11 = arith.truncf %10 : vector<64x32xf32> to vector<64x32xbf16>
    %c0_9 = arith.constant 0 : index
    %c0_10 = arith.constant 0 : index
    %12 = vector.load %arg5[%c0_9, %c0_10] : memref<64x32xbf16, #tpu.memory_space<vmem>>, vector<64x32xbf16>
    tpu.vector_store %arg5[%c0_9, %c0_10], %11 {strides = array<i32>} : memref<64x32xbf16, #tpu.memory_space<vmem>>, vector<64x32xbf16>,
    return
  }
  func.func @transform_0(%arg0: i32) -> (i32, i32) {
    %c0_i32 = arith.constant 0 : i32
    %c0_i32_0 = arith.constant 0 : i32
    return %arg0, %c0_i32 : i32, i32
  }
  func.func @transform_1(%arg0: i32) -> (i32, i32) {
    %c0_i32 = arith.constant 0 : i32
    %c0_i32_0 = arith.constant 0 : i32
    %c0_i32_1 = arith.constant 0 : i32
    return %c0_i32, %c0_i32_0 : i32, i32
  }
  func.func @transform_2(%arg0: i32) -> (i32, i32) {
    %c0_i32 = arith.constant 0 : i32
    %c0_i32_0 = arith.constant 0 : i32
    %c0_i32_1 = arith.constant 0 : i32
    return %c0_i32, %c0_i32_0 : i32, i32
  }
  func.func @transform_3(%arg0: i32) -> (i32, i32) {
    %c0_i32 = arith.constant 0 : i32
    %c0_i32_0 = arith.constant 0 : i32
    %c0_i32_1 = arith.constant 0 : i32
    return %c0_i32, %c0_i32_0 : i32, i32
  }
  func.func @transform_4(%arg0: i32) -> (i32, i32) {
    %c0_i32 = arith.constant 0 : i32
    %c0_i32_0 = arith.constant 0 : i32
    return %arg0, %c0_i32 : i32, i32
  }
}

</mosaic_0001>

<llo_original>
// kernel: tpu_custom_call.1
$region0: #{tpu_custom_call.1}
  #allocation0 [shape = 'u32[]', space=smem, size = 0x4, offset = 0x4, fixed_abs, tag = 'smem constant byte address 0x4 - core index']
  #allocation1 [shape = 'u32[72,128]{1,0:T(1,128)}', space=vmem, size = 0x9000, scoped, tag = 'internal scratch']
  %s0 = inlined_call_operand.vmem [shape: bf16[128,128], index: 0, kind: input, shape index: {}]
  %s1 = inlined_call_operand.vmem [shape: bf16[128,64], index: 1, kind: input, shape index: {}]
  %s2 = inlined_call_operand.vmem [shape: bf16[64,32], index: 2, kind: input, shape index: {}]
  %s3 = inlined_call_operand.vmem [shape: f32[1,32], index: 3, kind: input, shape index: {}]
  %s4 = inlined_call_operand.vmem [shape: bf16[128,32], index: 4, kind: output, shape index: {}]
  %s5 = sld [smem:[#allocation0]]
  $region49: #{tpu_custom_call.1} parent=0
    _
  %s7 = ssub.s32 1, %s5
  %s8 = scalar_select 0, %s7, %s5
  loop: start=0, step=1, limit=4
  $region2: #{tpu_custom_call.1} parent=0 // loop_pre_header
    _
  $region3: #{tpu_custom_call.1} parent=0 // loop_header
    %s10 = sphi 0, %s14
    %p11 = scmp.ge.s32.totalorder %s10, 4
    %s20 = sphi 0, %s22
    %s23 = sphi 0, %s20
    %s24 = sphi 0, %s23
    %s40 = sphi 0, %s24
    %s44 = sphi 0, %s44
    %s46 = sphi 0, %s44
    %s47 = sphi 0, %s46
    %s61 = sphi 0, %s47
    %s65 = sphi 0, %s65
    %s67 = sphi 0, %s65
    %s68 = sphi 0, %s67
    %s82 = sphi 0, %s68
    %s86 = sphi 0, %s86
    %s88 = sphi 0, %s86
    %s89 = sphi 0, %s88
    %s103 = sphi 0, %s89
    %s109 = sphi 0, %s111
    %s112 = sphi 0, %s109
    %s113 = sphi 0, %s112
    %s129 = sphi 0, %s113
  $region4: #{tpu_custom_call.1} parent=0 // loop_header_branch
    %13 = sbr.rel (%p11) target = $region8
  $region5: #{tpu_custom_call.1} parent=0 // loop_body
    %s15 = ssub.s32 %s10, 1
    %s16 = ssub.s32 %s10, 2
    %s17 = sadd.s32 %s10, 1
    %s18 = ssub.s32 %s10, %s17
    %p19 = scmp.eq.s32.totalorder %s18, 0
    %s21 = sadd.s32 %s20, 1
    %s22 = scalar_select %p19, %s20, %s21
    %p25 = pneg %p19
    %p26 = scmp.eq.s32.totalorder %s10, 1
    %p27 = por %p25, %p26
    %p28 = scmp.ne.s32.totalorder %s20, %s23
    %p29 = scmp.eq.s32.totalorder %s10, 0
    %p30 = por %p28, %p29
    %p31 = scmp.ne.s32.totalorder %s20, %s23
    %p32 = scmp.eq.s32.totalorder %s15, 1
    %p33 = por %p31, %p32
    %p34 = scmp.ne.s32.totalorder %s23, %s24
    %p35 = scmp.eq.s32.totalorder %s15, 0
    %p36 = por %p34, %p35
    %p37 = scmp.ne.s32.totalorder %s23, %s24
    %p38 = scmp.eq.s32.totalorder %s16, 1
    %p39 = por %p37, %p38
    %p41 = scmp.ne.s32.totalorder %s24, %s40
    %p42 = scmp.eq.s32.totalorder %s16, 0
    %p43 = por %p41, %p42
    %s45 = sadd.s32 %s44, 1
    %p48 = scmp.eq.s32.totalorder %s10, 1
    %p49 = scmp.ne.s32.totalorder %s44, %s46
    %p50 = scmp.eq.s32.totalorder %s10, 0
    %p51 = por %p49, %p50
    %p52 = scmp.ne.s32.totalorder %s44, %s46
    %p53 = scmp.eq.s32.totalorder %s15, 1
    %p54 = por %p52, %p53
    %p55 = scmp.ne.s32.totalorder %s46, %s47
    %p56 = scmp.eq.s32.totalorder %s15, 0
    %p57 = por %p55, %p56
    %p58 = scmp.ne.s32.totalorder %s46, %s47
    %p59 = scmp.eq.s32.totalorder %s16, 1
    %p60 = por %p58, %p59
    %p62 = scmp.ne.s32.totalorder %s47, %s61
    %p63 = scmp.eq.s32.totalorder %s16, 0
    %p64 = por %p62, %p63
    %s66 = sadd.s32 %s65, 1
    %p69 = scmp.eq.s32.totalorder %s10, 1
    %p70 = scmp.ne.s32.totalorder %s65, %s67
    %p71 = scmp.eq.s32.totalorder %s10, 0
    %p72 = por %p70, %p71
    %p73 = scmp.ne.s32.totalorder %s65, %s67
    %p74 = scmp.eq.s32.totalorder %s15, 1
    %p75 = por %p73, %p74
    %p76 = scmp.ne.s32.totalorder %s67, %s68
    %p77 = scmp.eq.s32.totalorder %s15, 0
    %p78 = por %p76, %p77
    %p79 = scmp.ne.s32.totalorder %s67, %s68
    %p80 = scmp.eq.s32.totalorder %s16, 1
    %p81 = por %p79, %p80
    %p83 = scmp.ne.s32.totalorder %s68, %s82
    %p84 = scmp.eq.s32.totalorder %s16, 0
    %p85 = por %p83, %p84
    %s87 = sadd.s32 %s86, 1
    %p90 = scmp.eq.s32.totalorder %s10, 1
    %p91 = scmp.ne.s32.totalorder %s86, %s88
    %p92 = scmp.eq.s32.totalorder %s10, 0
    %p93 = por %p91, %p92
    %p94 = scmp.ne.s32.totalorder %s86, %s88
    %p95 = scmp.eq.s32.totalorder %s15, 1
    %p96 = por %p94, %p95
    %p97 = scmp.ne.s32.totalorder %s88, %s89
    %p98 = scmp.eq.s32.totalorder %s15, 0
    %p99 = por %p97, %p98
    %p100 = scmp.ne.s32.totalorder %s88, %s89
    %p101 = scmp.eq.s32.totalorder %s16, 1
    %p102 = por %p100, %p101
    %p104 = scmp.ne.s32.totalorder %s89, %s103
    %p105 = scmp.eq.s32.totalorder %s16, 0
    %p106 = por %p104, %p105
    %s107 = ssub.s32 %s10, %s17
    %p108 = scmp.eq.s32.totalorder %s107, 0
    %s110 = sadd.s32 %s109, 1
    %s111 = scalar_select %p108, %s109, %s110
    %p114 = pneg %p108
    %p115 = scmp.eq.s32.totalorder %s10, 1
    %p116 = por %p114, %p115
    %p117 = scmp.ne.s32.totalorder %s109, %s112
    %p118 = scmp.eq.s32.totalorder %s10, 0
    %p119 = por %p117, %p118
    %p120 = scmp.ne.s32.totalorder %s109, %s112
    %p121 = scmp.eq.s32.totalorder %s15, 1
    %p122 = por %p120, %p121
    %p123 = scmp.ne.s32.totalorder %s112, %s113
    %p124 = scmp.eq.s32.totalorder %s15, 0
    %p125 = por %p123, %p124
    %p126 = scmp.ne.s32.totalorder %s112, %s113
    %p127 = scmp.eq.s32.totalorder %s16, 1
    %p128 = por %p126, %p127
    %p130 = scmp.ne.s32.totalorder %s113, %s129
    %p131 = scmp.eq.s32.totalorder %s16, 0
    %p132 = por %p130, %p131
    %p133 = scmp.le.s32.totalorder 1, %s10
    %p134 = scmp.lt.s32.totalorder %s10, 3
    %p135 = pnand %p133, %p134
    %p136 = pneg %p135
    // Predicated region
    $region9: #{tpu_custom_call.1} parent=5 // pred_check
      _
    $region10: #{tpu_custom_call.1} parent=5 // pred_check_branch
      %138 = sbr.rel (%p135) target = $region12
    $region11: #{tpu_custom_call.1} parent=5 // pred_region
      %s139 = ssub.s32 %s10, 1
      // Predicated region
      $region13: #{tpu_custom_call.1} parent=11 // pred_check
        %p140 = pneg %p57
      $region14: #{tpu_custom_call.1} parent=11 // pred_check_branch
        %142 = sbr.rel (%p140) target = $region16
      $region15: #{tpu_custom_call.1} parent=11 // pred_region
        _
      $region16: #{tpu_custom_call.1} parent=11 // pred_fallthru
        _
      // Predicated region
      $region17: #{tpu_custom_call.1} parent=11 // pred_check
        %p143 = pneg %p78
      $region18: #{tpu_custom_call.1} parent=11 // pred_check_branch
        %145 = sbr.rel (%p143) target = $region20
      $region19: #{tpu_custom_call.1} parent=11 // pred_region
        _
      $region20: #{tpu_custom_call.1} parent=11 // pred_fallthru
        _
      // Predicated region
      $region21: #{tpu_custom_call.1} parent=11 // pred_check
        %p146 = pneg %p99
      $region22: #{tpu_custom_call.1} parent=11 // pred_check_branch
        %148 = sbr.rel (%p146) target = $region24
      $region23: #{tpu_custom_call.1} parent=11 // pred_region
        _
      $region24: #{tpu_custom_call.1} parent=11 // pred_fallthru
        _
    $region12: #{tpu_custom_call.1} parent=5 // pred_fallthru
      _
    %p149 = scmp.lt.s32.totalorder %s10, 2
    // Predicated region
    $region25: #{tpu_custom_call.1} parent=5 // pred_check
      %p150 = pneg %p149
    $region26: #{tpu_custom_call.1} parent=5 // pred_check_branch
      %152 = sbr.rel (%p150) target = $region28
    $region27: #{tpu_custom_call.1} parent=5 // pred_region
      // Predicated region
      $region29: #{tpu_custom_call.1} parent=27 // pred_check
        %p153 = pneg %p30
      $region30: #{tpu_custom_call.1} parent=27 // pred_check_branch
        %155 = sbr.rel (%p153) target = $region32
      $region31: #{tpu_custom_call.1} parent=27 // pred_region
        %s156 = smul.u32 8, %s10
        %p157 = scmp.lt.s32.totalorder %s156, 15
        %s158 = scalar_select %p157, %s156, 15
        %s159 = smul.addr %s158, 4
        %s160 = scalar_lea.vmem %s0, %s159
        %s161 = smul.u32 8, %s10
      $region32: #{tpu_custom_call.1} parent=27 // pred_fallthru
        _
    $region28: #{tpu_custom_call.1} parent=5 // pred_fallthru
      _
    %p162 = scmp.le.s32.totalorder 1, %s10
    %p163 = scmp.lt.s32.totalorder %s10, 3
    %p164 = pnand %p162, %p163
    %p165 = pneg %p164
    // Predicated region
    $region33: #{tpu_custom_call.1} parent=5 // pred_check
      _
    $region34: #{tpu_custom_call.1} parent=5 // pred_check_branch
      %167 = sbr.rel (%p164) target = $region36
    $region35: #{tpu_custom_call.1} parent=5 // pred_region
      %s168 = ssub.s32 %s10, 1
      %s169 = smul.u32 8, %s15
      %p170 = scmp.lt.s32.totalorder %s169, 15
      %s171 = scalar_select %p170, %s169, 15
      %s172 = smul.addr %s171, 4
      %s173 = scalar_lea.vmem %s0, %s172
      %p174 = pneg %p36
      %p175 = pneg %p33
      %p176 = pneg %p57
      %p177 = pneg %p54
      %p178 = pneg %p78
      %p179 = pneg %p75
      %p180 = pneg %p99
      %p181 = pneg %p96
      %p182 = pneg %p125
      %p183 = pneg %p122
      %s184 = smul.u32 8, %s15
      %p185 = scmp.lt.s32.totalorder %s184, 15
      %s186 = scalar_select %p185, %s184, 15
      %s187 = smul.addr %s186, 4
      %s188 = scalar_lea.vmem %s4, %s187
      %s189 = smul.u32 8, %s15
      %p190 = scmp.lt.s32.totalorder %s189, 15
      %s191 = scalar_select %p190, %s189, 15
      %s192 = smul.addr %s191, 4
      %s193 = scalar_lea.vmem %s0, %s192
      %s194 = smul.u32 8, %s15
      %s195 = smul.u32 8, %s15
      %p196 = scmp.lt.s32.totalorder %s195, 15
      %s197 = scalar_select %p196, %s195, 15
      %s198 = smul.addr %s197, 4
      %s199 = scalar_lea.vmem %s4, %s198
      %s200 = smul.u32 8, %s15
      %v202 = vld [vmem:[%s193] sm:$0xf]
      %v203 = vld [vmem:[%s193 + $0x4] sm:$0xf]
      %v204 = vld [vmem:[%s193 + $0x8] sm:$0xf]
      %v205 = vld [vmem:[%s193 + $0xc] sm:$0xf]
      %v206 = vld [vmem:[%s193 + $0x10] sm:$0xf]
      %v207 = vld [vmem:[%s193 + $0x14] sm:$0xf]
      %v208 = vld [vmem:[%s193 + $0x18] sm:$0xf]
      %v209 = vld [vmem:[%s193 + $0x1c] sm:$0xf]
      %v210 = vld [vmem:[%s1] sm:$0xf]
      %v211 = vld [vmem:[%s1 + $0x4] sm:$0xf]
      %v212 = vld [vmem:[%s1 + $0x8] sm:$0xf]
      %v213 = vld [vmem:[%s1 + $0xc] sm:$0xf]
      %v214 = vld [vmem:[%s1 + $0x10] sm:$0xf]
      %v215 = vld [vmem:[%s1 + $0x14] sm:$0xf]
      %v216 = vld [vmem:[%s1 + $0x18] sm:$0xf]
      %v217 = vld [vmem:[%s1 + $0x1c] sm:$0xf]
      %v218 = vld [vmem:[%s1 + $0x20] sm:$0xf]
      %v219 = vld [vmem:[%s1 + $0x24] sm:$0xf]
      %v220 = vld [vmem:[%s1 + $0x28] sm:$0xf]
      %v221 = vld [vmem:[%s1 + $0x2c] sm:$0xf]
      %v222 = vld [vmem:[%s1 + $0x30] sm:$0xf]
      %v223 = vld [vmem:[%s1 + $0x34] sm:$0xf]
      %v224 = vld [vmem:[%s1 + $0x38] sm:$0xf]
      %v225 = vld [vmem:[%s1 + $0x3c] sm:$0xf]
      %v226 = vld [vmem:[%s2] sm:$0xf]
      %v227 = vld [vmem:[%s2 + $0x4] sm:$0xf]
      %v228 = vld [vmem:[%s2 + $0x8] sm:$0xf]
      %v229 = vld [vmem:[%s2 + $0xc] sm:$0xf]
      %v230 = vld [vmem:[%s2 + $0x10] sm:$0xf]
      %v231 = vld [vmem:[%s2 + $0x14] sm:$0xf]
      %v232 = vld [vmem:[%s2 + $0x18] sm:$0xf]
      %v233 = vld [vmem:[%s2 + $0x1c] sm:$0xf]
      %v250 = vunpack.c.l.b16 %v210
      %v251 = vunpack.c.l.b16 %v211
      %v252 = vunpack.c.l.b16 %v212
      %v253 = vunpack.c.l.b16 %v213
      %v254 = vunpack.c.l.b16 %v214
      %v255 = vunpack.c.l.b16 %v215
      %v256 = vunpack.c.l.b16 %v216
      %v257 = vunpack.c.l.b16 %v217
      %v258 = vunpack.c.l.b16 %v218
      %v259 = vunpack.c.l.b16 %v219
      %v260 = vunpack.c.l.b16 %v220
      %v261 = vunpack.c.l.b16 %v221
      %v262 = vunpack.c.l.b16 %v222
      %v263 = vunpack.c.l.b16 %v223
      %v264 = vunpack.c.l.b16 %v224
      %v265 = vunpack.c.l.b16 %v225
      %v266 = vpack.c.b16 %v251, %v250
      %v267 = vpack.c.b16 %v253, %v252
      %v268 = vpack.c.b16 %v255, %v254
      %v269 = vpack.c.b16 %v257, %v256
      %v270 = vpack.c.b16 %v259, %v258
      %v271 = vpack.c.b16 %v261, %v260
      %v272 = vpack.c.b16 %v263, %v262
      %v273 = vpack.c.b16 %v265, %v264
      %v282 = vunpack.c.l.b16 %v226
      %v283 = vunpack.c.l.b16 %v227
      %v284 = vunpack.c.l.b16 %v228
      %v285 = vunpack.c.l.b16 %v229
      %v286 = vunpack.c.l.b16 %v230
      %v287 = vunpack.c.l.b16 %v231
      %v288 = vunpack.c.l.b16 %v232
      %v289 = vunpack.c.l.b16 %v233
      %v290 = vpack.c.b16 %v283, %v282
      %v291 = vpack.c.b16 %v285, %v284
      %v292 = vpack.c.b16 %v287, %v286
      %v293 = vpack.c.b16 %v289, %v288
      %vm298 = vcmask 523264
      %v300 = vsel %vm298, %v266, 0
      %v303 = vsel %vm298, %v267, 0
      %v306 = vsel %vm298, %v268, 0
      %v309 = vsel %vm298, %v269, 0
      %v312 = vsel %vm298, %v270, 0
      %v315 = vsel %vm298, %v271, 0
      %v318 = vsel %vm298, %v272, 0
      %v321 = vsel %vm298, %v273, 0
      %323 = vmatpush.bf16.msra.mxu0 0
      %324 = vmatpush.bf16.msra.mxu0 0
      %325 = vmatpush.bf16.msra.mxu0 0
      %326 = vmatpush.bf16.msra.mxu0 0
      %327 = vmatpush.bf16.msra.mxu0 %v293
      %328 = vmatpush.bf16.msra.mxu0 %v292
      %329 = vmatpush.bf16.msra.mxu0 %v291
      %330 = vmatpush.bf16.msra.mxu0 %v290
      %331 = vmatmul.bf16.gmra.mxu0 %v300
      %v332 = vpop.f32.mrf.mxu0
      %v333 = vadd.f32 0.0, %v332
      %v334 = vpop.f32.mrf.mxu0
      %v335 = vadd.f32 0.0, %v334
      %336 = vmatmul.bf16.gmra.mxu0 %v303
      %v337 = vpop.f32.mrf.mxu0
      %v338 = vadd.f32 0.0, %v337
      %v339 = vpop.f32.mrf.mxu0
      %v340 = vadd.f32 0.0, %v339
      %341 = vmatmul.bf16.gmra.mxu0 %v306
      %v342 = vpop.f32.mrf.mxu0
      %v343 = vadd.f32 0.0, %v342
      %v344 = vpop.f32.mrf.mxu0
      %v345 = vadd.f32 0.0, %v344
      %346 = vmatmul.bf16.gmra.mxu0 %v309
      %v347 = vpop.f32.mrf.mxu0
      %v348 = vadd.f32 0.0, %v347
      %v349 = vpop.f32.mrf.mxu0
      %v350 = vadd.f32 0.0, %v349
      %351 = vmatmul.bf16.gmra.mxu0 %v312
      %v352 = vpop.f32.mrf.mxu0
      %v353 = vadd.f32 0.0, %v352
      %v354 = vpop.f32.mrf.mxu0
      %v355 = vadd.f32 0.0, %v354
      %356 = vmatmul.bf16.gmra.mxu0 %v315
      %v357 = vpop.f32.mrf.mxu0
      %v358 = vadd.f32 0.0, %v357
      %v359 = vpop.f32.mrf.mxu0
      %v360 = vadd.f32 0.0, %v359
      %361 = vmatmul.bf16.gmra.mxu0 %v318
      %v362 = vpop.f32.mrf.mxu0
      %v363 = vadd.f32 0.0, %v362
      %v364 = vpop.f32.mrf.mxu0
      %v365 = vadd.f32 0.0, %v364
      %366 = vmatmul.bf16.gmra.mxu0 %v321
      %v367 = vpop.f32.mrf.mxu0
      %v368 = vadd.f32 0.0, %v367
      %v369 = vpop.f32.mrf.mxu0
      %v370 = vadd.f32 0.0, %v369
      %371 = vdwg.mxu0
      %v372 = vpack.c.bf16 %v335, %v333
      %v373 = vpack.c.bf16 %v340, %v338
      %v374 = vpack.c.bf16 %v345, %v343
      %v375 = vpack.c.bf16 %v350, %v348
      %v376 = vpack.c.bf16 %v355, %v353
      %v377 = vpack.c.bf16 %v360, %v358
      %v378 = vpack.c.bf16 %v365, %v363
      %v379 = vpack.c.bf16 %v370, %v368
      %v380 = vld [vmem:[%s3] sm:$0x1]
      %v382 = vperm.slane %v380, 0
      %v392 = vunpack.c.l.b16 %v202
      %v393 = vunpack.c.l.b16 %v203
      %v394 = vunpack.c.l.b16 %v204
      %v395 = vunpack.c.l.b16 %v205
      %v396 = vunpack.c.l.b16 %v206
      %v397 = vunpack.c.l.b16 %v207
      %v398 = vunpack.c.l.b16 %v208
      %v399 = vunpack.c.l.b16 %v209
      %v400 = vpack.c.b16 %v393, %v392
      %v401 = vpack.c.b16 %v395, %v394
      %v402 = vpack.c.b16 %v397, %v396
      %v403 = vpack.c.b16 %v399, %v398
      %408 = vmatpush.bf16.msra.mxu0 %v379
      %409 = vmatpush.bf16.msra.mxu0 %v378
      %410 = vmatpush.bf16.msra.mxu0 %v377
      %411 = vmatpush.bf16.msra.mxu0 %v376
      %412 = vmatpush.bf16.msra.mxu0 %v375
      %413 = vmatpush.bf16.msra.mxu0 %v374
      %414 = vmatpush.bf16.msra.mxu0 %v373
      %415 = vmatpush.bf16.msra.mxu0 %v372
      %416 = vmatmul.bf16.gmra.mxu0 %v400
      %v417 = vpop.f32.mrf.mxu0
      %v418 = vadd.f32 %v382, %v417
      %v419 = vpop.f32.mrf.mxu0
      %v420 = vadd.f32 %v382, %v419
      %421 = vmatmul.bf16.gmra.mxu0 %v401
      %v422 = vpop.f32.mrf.mxu0
      %v423 = vadd.f32 %v382, %v422
      %v424 = vpop.f32.mrf.mxu0
      %v425 = vadd.f32 %v382, %v424
      %426 = vmatmul.bf16.gmra.mxu0 %v402
      %v427 = vpop.f32.mrf.mxu0
      %v428 = vadd.f32 %v382, %v427
      %v429 = vpop.f32.mrf.mxu0
      %v430 = vadd.f32 %v382, %v429
      %431 = vmatmul.bf16.gmra.mxu0 %v403
      %v432 = vpop.f32.mrf.mxu0
      %v433 = vadd.f32 %v382, %v432
      %v434 = vpop.f32.mrf.mxu0
      %v435 = vadd.f32 %v382, %v434
      %436 = vdwg.mxu0
      %v437 = vmax.f32 %v418, 0.0
      %v438 = vmax.f32 %v420, 0.0
      %v439 = vmax.f32 %v423, 0.0
      %v440 = vmax.f32 %v425, 0.0
      %v441 = vmax.f32 %v428, 0.0
      %v442 = vmax.f32 %v430, 0.0
      %v443 = vmax.f32 %v433, 0.0
      %v444 = vmax.f32 %v435, 0.0
      %v445 = vpack.c.bf16 %v437, %v437
      %v446 = vpack.c.bf16 %v438, %v438
      %v447 = vpack.c.bf16 %v439, %v439
      %v448 = vpack.c.bf16 %v440, %v440
      %v449 = vpack.c.bf16 %v441, %v441
      %v450 = vpack.c.bf16 %v442, %v442
      %v451 = vpack.c.bf16 %v443, %v443
      %v452 = vpack.c.bf16 %v444, %v444
      %vm453 = vcmask 257024
      %454 = vst.msk [vmem:[%s199] sm:$0xf] %vm453, %v445
      %455 = vst.msk [vmem:[%s199 + $0x4] sm:$0xf] %vm453, %v446
      %456 = vst.msk [vmem:[%s199 + $0x8] sm:$0xf] %vm453, %v447
      %457 = vst.msk [vmem:[%s199 + $0xc] sm:$0xf] %vm453, %v448
      %458 = vst.msk [vmem:[%s199 + $0x10] sm:$0xf] %vm453, %v449
      %459 = vst.msk [vmem:[%s199 + $0x14] sm:$0xf] %vm453, %v450
      %460 = vst.msk [vmem:[%s199 + $0x18] sm:$0xf] %vm453, %v451
      %461 = vst.msk [vmem:[%s199 + $0x1c] sm:$0xf] %vm453, %v452
      %s462 = smul.u32 8, %s15
      %p463 = scmp.lt.s32.totalorder %s462, 15
      %s464 = scalar_select %p463, %s462, 15
      %s465 = smul.addr %s464, 4
      %s466 = scalar_lea.vmem %s4, %s465
      // Predicated region
      $region37: #{tpu_custom_call.1} parent=35 // pred_check
        %p467 = pneg %p122
      $region38: #{tpu_custom_call.1} parent=35 // pred_check_branch
        %469 = sbr.rel (%p467) target = $region40
      $region39: #{tpu_custom_call.1} parent=35 // pred_region
        %s470 = smul.u32 8, %s15
      $region40: #{tpu_custom_call.1} parent=35 // pred_fallthru
        _
    $region36: #{tpu_custom_call.1} parent=5 // pred_fallthru
      _
    %p471 = scmp.le.s32.totalorder 2, %s10
    // Predicated region
    $region41: #{tpu_custom_call.1} parent=5 // pred_check
      %p472 = pneg %p471
    $region42: #{tpu_custom_call.1} parent=5 // pred_check_branch
      %474 = sbr.rel (%p472) target = $region44
    $region43: #{tpu_custom_call.1} parent=5 // pred_region
      %s475 = ssub.s32 %s10, 2
      // Predicated region
      $region45: #{tpu_custom_call.1} parent=43 // pred_check
        %p476 = pneg %p128
      $region46: #{tpu_custom_call.1} parent=43 // pred_check_branch
        %478 = sbr.rel (%p476) target = $region48
      $region47: #{tpu_custom_call.1} parent=43 // pred_region
        %s479 = smul.u32 8, %s16
        %p480 = scmp.lt.s32.totalorder %s479, 15
        %s481 = scalar_select %p480, %s479, 15
        %s482 = smul.addr %s481, 4
        %s483 = scalar_lea.vmem %s4, %s482
      $region48: #{tpu_custom_call.1} parent=43 // pred_fallthru
        _
    $region44: #{tpu_custom_call.1} parent=5 // pred_fallthru
      _
  $region6: #{tpu_custom_call.1} parent=0 // loop_footer
    %s14 = sadd.s32 1, %s10
  $region7: #{tpu_custom_call.1} parent=0 // loop_footer_branch
    %9 = sbr.rel target = $region3
  $region8: #{tpu_custom_call.1} parent=0 // loop_exit
    _

</llo_original>
